<compile_context>
chip_gen: v7x
topology: tpu7x:2x2x1
jax: 0.10.0
libtpu: 0.0.40
codegen_flags: <defaults>
</compile_context>

<pallas_src>
import jax
import jax.numpy as jnp
from jax.experimental import pallas as pl
from jax.experimental.pallas import tpu as pltpu


def _copy_kernel(x_ref, o_ref):
    # Pure tile copy: identical block shapes and index maps for input/output.
    o_ref[...] = x_ref[...]


def _round_up(x: int, m: int) -> int:
    return ((x + m - 1) // m) * m


def chomp1d(x: jax.Array, chomp_size: int) -> jax.Array:
    """Equivalent of Chomp1d(chomp_size)(x) for x of shape (N, C, L)."""
    assert chomp_size > 0, "chomp_size must be positive (matches PyTorch x[:, :, :-k])"
    n, c, l = x.shape
    l_out = l - chomp_size
    assert l_out > 0, "chomp_size must be smaller than the sequence length"

    rows = n * c
    # Free for contiguous row-major (N, C, L) data; a non-default upstream
    # layout would force XLA to materialize a copy here.
    x2 = x.reshape(rows, l)

    itemsize = jnp.dtype(x.dtype).itemsize
    # Sublane alignment for packed dtypes (32-bit container).
    sublane = {4: 8, 2: 16, 1: 32}.get(itemsize, 8)

    # --- Byte-budgeted, dtype-scaled tile caps (~4 MiB per tile) ------------
    # Lane cap scales with 1/itemsize so tile bytes are constant across dtypes:
    #   f32: 512 x 2048, bf16: 512 x 4096, int8: 512 x 8192 -> 4 MiB each.
    l_cap = 2048 * max(1, 4 // itemsize)  # multiple of 128 by construction
    r_cap = 512

    # Balanced L tiling: avoid a tiny ragged last tile.
    n_l_tiles = pl.cdiv(l_out, l_cap)
    l_tile = min(_round_up(pl.cdiv(l_out, n_l_tiles), 128), l_cap)

    # Balanced, sublane-aligned row tiling (clamped for tiny inputs).
    n_r_tiles = pl.cdiv(rows, r_cap)
    r_tile = min(_round_up(pl.cdiv(rows, n_r_tiles), sublane), _round_up(rows, sublane))

    grid = (pl.cdiv(rows, r_tile), pl.cdiv(l_out, l_tile))

    # VMEM footprint: 2 arrays x 2 pipeline buffers x tile_bytes, plus headroom.
    tile_bytes = r_tile * l_tile * itemsize
    vmem_limit = min(max(4 * tile_bytes + (8 << 20), 16 << 20), 48 << 20)

    out2 = pl.pallas_call(
        _copy_kernel,
        out_shape=jax.ShapeDtypeStruct((rows, l_out), x.dtype),
        grid=grid,
        # Same block shape + same index_map for input and output: the block at
        # (i, j) covers element offsets (i*r_tile, j*l_tile) in both arrays.
        in_specs=[pl.BlockSpec((r_tile, l_tile), lambda i, j: (i, j))],
        out_specs=pl.BlockSpec((r_tile, l_tile), lambda i, j: (i, j)),
        compiler_params=pltpu.CompilerParams(
            dimension_semantics=("parallel", "parallel"),
            vmem_limit_bytes=vmem_limit,
        ),
        cost_estimate=pl.CostEstimate(
            flops=0,
            transcendentals=0,
            bytes_accessed=2 * rows * l_out * itemsize,
        ),
    )(x2)

    return out2.reshape(n, c, l_out)


if __name__ == "__main__":
    key = jax.random.PRNGKey(0)

    # Small primary test matching the module's expected NCL layout.
    N, C, L = 2, 4, 16
    chomp_size = 3
    x = jax.random.normal(key, (N, C, L), dtype=jnp.float32)

    out = chomp1d(x, chomp_size)
    out = jax.block_until_ready(out)

    ref = x[:, :, :-chomp_size]
    assert out.shape == (N, C, L - chomp_size)
    assert jnp.array_equal(out, ref)

    # Secondary check exercising multiple / partial L tiles and bf16 packing.
    key2 = jax.random.PRNGKey(1)
    x2 = jax.random.normal(key2, (2, 8, 1300), dtype=jnp.bfloat16)
    out2 = jax.block_until_ready(chomp1d(x2, 5))
    assert out2.shape == (2, 8, 1295)
    assert jnp.array_equal(out2, x2[:, :, :-5])

    # Larger-ish check exercising multiple balanced row/L tiles.
    key3 = jax.random.PRNGKey(2)
    x3 = jax.random.normal(key3, (4, 160, 2200), dtype=jnp.float32)
    out3 = jax.block_until_ready(chomp1d(x3, 7))
    assert out3.shape == (4, 160, 2193)
    assert jnp.array_equal(out3, x3[:, :, :-7])

    print("KERNEL_OK")
</pallas_src>

<mosaic_0001>
module attributes {stable_mosaic.version = 11 : i64} {
  func.func @_copy_kernel(%arg0: i32, %arg1: i32, %arg2: memref<8x128xf32, #tpu.memory_space<vmem>>, %arg3: memref<8x128xf32, #tpu.memory_space<vmem>>) attributes {dimension_semantics = [#tpu.dimension_semantics<parallel>, #tpu.dimension_semantics<parallel>], iteration_bounds = array<i64: 1, 1>, scalar_prefetch = 0 : i64, scratch_operands = 0 : i64, tpu.core_type = #tpu.core_type<tc>, window_params = [{transform_indices = @transform_0, window_bounds = array<i64: 8, 128>}, {transform_indices = @transform_1, window_bounds = array<i64: 8, 128>}]} {
    %c0 = arith.constant 0 : index
    %c0_0 = arith.constant 0 : index
    %0 = vector.load %arg2[%c0, %c0_0] : memref<8x128xf32, #tpu.memory_space<vmem>>, vector<8x128xf32>
    %c0_1 = arith.constant 0 : index
    %c0_2 = arith.constant 0 : index
    %1 = vector.load %arg3[%c0_1, %c0_2] : memref<8x128xf32, #tpu.memory_space<vmem>>, vector<8x128xf32>
    tpu.vector_store %arg3[%c0_1, %c0_2], %0 {strides = array<i32>} : memref<8x128xf32, #tpu.memory_space<vmem>>, vector<8x128xf32>,
    return
  }
  func.func @transform_0(%arg0: i32, %arg1: i32) -> (i32, i32) {
    %c0_i32 = arith.constant 0 : i32
    return %arg0, %arg1 : i32, i32
  }
  func.func @transform_1(%arg0: i32, %arg1: i32) -> (i32, i32) {
    %c0_i32 = arith.constant 0 : i32
    return %arg0, %arg1 : i32, i32
  }
}

</mosaic_0001>

<llo_original>
// kernel: tpu_custom_call.1
$region0: #{tpu_custom_call.1}
  #allocation0 [shape = 'u32[]', space=smem, size = 0x4, offset = 0x4, fixed_abs, tag = 'smem constant byte address 0x4 - core index']
  #allocation1 [shape = 'u32[144,128]{1,0:T(1,128)}', space=vmem, size = 0x12000, scoped, tag = 'internal scratch']
  %s0 = inlined_call_operand.hbm [shape: f32[8,16], index: 0, kind: input, shape index: {}]
  %s1 = inlined_call_operand.hbm [shape: f32[8,13], index: 1, kind: output, shape index: {}]
  %s2 = sld [smem:[#allocation0]]
  $region18: #{tpu_custom_call.1} parent=0
    _
  %s4 = ssub.s32 1, %s2
  %s5 = scalar_select 0, %s4, %s2
  $region1: #{tpu_custom_call.1} parent=0
    #allocation2 [shape = 'u8[4096]{0}', space=vmem, size = 0x1000, scoped, tag = 'input window, operand 0, single buffered']
    #allocation3 [shape = 's32[1]{0}', space=sflag, size = 0x4, scoped, tag = 'scoped memory for tpu_custom_call.1']
    #allocation4 [shape = 's32[1]{0}', space=sflag, size = 0x4, scoped, tag = 'scoped memory for tpu_custom_call.1']
    #allocation5 [shape = 'u8[4096]{0}', space=vmem, size = 0x1000, scoped, tag = 'output window, operand 0, single buffered']
    %6 = vsyncpa [#allocation3], 0
    %7 = vsyncpa [#allocation4], 0
    // Predicated region
    $region2: #{tpu_custom_call.1} parent=1 // pred_check
      _
    $region3: #{tpu_custom_call.1} parent=1 // pred_check_branch
      %9 = sbr.rel (0) target = $region5
    $region4: #{tpu_custom_call.1} parent=1 // pred_region
      %s11 = ssub.s32 128, 128
      %12 = vsyncadd [#allocation3], %s11
      %s14 = sshll.u32 [#allocation2], 4
      %s15 = int_to_ptr.vmem [resolvable:$true] %s14
      %17 = dma.hbm_to_vmem [thread:$0]  %s0, 128, %s15, [#allocation3]
    $region5: #{tpu_custom_call.1} parent=1 // pred_fallthru
      _
    // Predicated region
    $region6: #{tpu_custom_call.1} parent=1 // pred_check
      _
    $region7: #{tpu_custom_call.1} parent=1 // pred_check_branch
      %19 = sbr.rel (0) target = $region9
    $region8: #{tpu_custom_call.1} parent=1 // pred_region
      %20 = dma.done [#allocation3], 128
    $region9: #{tpu_custom_call.1} parent=1 // pred_fallthru
      _
    %v21 = vld [vmem:[#allocation2] sm:$0xff]
    %22 = vst [vmem:[#allocation5] sm:$0xff] %v21
    // Predicated region
    $region10: #{tpu_custom_call.1} parent=1 // pred_check
      _
    $region11: #{tpu_custom_call.1} parent=1 // pred_check_branch
      %24 = sbr.rel (0) target = $region13
    $region12: #{tpu_custom_call.1} parent=1 // pred_region
      %s26 = ssub.s32 128, 128
      %27 = vsyncadd [#allocation4], %s26
      %s29 = sshll.u32 [#allocation5], 4
      %s30 = int_to_ptr.vmem [resolvable:$true] %s29
      %32 = dma.vmem_to_hbm [thread:$0]  %s30, 128, %s1, [#allocation4]
    $region13: #{tpu_custom_call.1} parent=1 // pred_fallthru
      _
    // Predicated region
    $region14: #{tpu_custom_call.1} parent=1 // pred_check
      _
    $region15: #{tpu_custom_call.1} parent=1 // pred_check_branch
      %34 = sbr.rel (0) target = $region17
    $region16: #{tpu_custom_call.1} parent=1 // pred_region
      %35 = dma.done [#allocation4], 128
    $region17: #{tpu_custom_call.1} parent=1 // pred_fallthru
      _
    %36 = vsyncpa [#allocation3], 1
    %37 = vsyncpa [#allocation4], 1

</llo_original>
